<compile_context>
chip_gen: v6e
topology: v6e:2x2x1
jax: 0.10.0
libtpu: 0.0.40
codegen_flags: <defaults>
</compile_context>

<pallas_src>
import jax
import jax.numpy as jnp
from jax import lax
from jax.experimental import pallas as pl
from jax.experimental.pallas import tpu as pltpu

_LANES = 128
_SUBLANES = 8
_LOG_CLAMP = -100.0  # PyTorch clamps log terms at -100 to avoid -inf.


def _bce_elementwise(p, t):
    """Per-element BCE with PyTorch's -100 log clamping (computed in f32)."""
    p = p.astype(jnp.float32)
    t = t.astype(jnp.float32)
    log_p = jnp.maximum(jnp.log(p), _LOG_CLAMP)
    log_1mp = jnp.maximum(jnp.log(1.0 - p), _LOG_CLAMP)
    return -(t * log_p + (1.0 - t) * log_1mp)


def _make_bce_kernel(tile_rows, chunk_rows, blocks_per_par, num_blocks,
                     needs_mask):
    """Build a kernel accumulating per-core (8,128) f32 partial BCE sums.

    Grid = (num_par, blocks_per_par); axis 0 is "parallel" (megacore on v7x),
    axis 1 is the "arbitrary" reduction axis. The output block index depends
    only on axis 0, so o_ref stays resident in VMEM across the reduction.
    """
    n_chunks = tile_rows // chunk_rows
    unroll = True if n_chunks <= 8 else 4

    def kernel(p_ref, t_ref, o_ref):
        @pl.when(pl.program_id(1) == 0)
        def _init():
            o_ref[...] = jnp.zeros_like(o_ref)

        def chunk_body(c, acc):
            r = pl.multiple_of(c * chunk_rows, chunk_rows)
            loss = _bce_elementwise(p_ref[pl.ds(r, chunk_rows), :],
                                    t_ref[pl.ds(r, chunk_rows), :])
            # (chunk_rows,128) f32 -> (chunk_rows/8, 8, 128) -> VPU adds.
            return acc + loss.reshape(-1, _SUBLANES, _LANES).sum(axis=0)

        def accumulate():
            acc = lax.fori_loop(0, n_chunks, chunk_body,
                                jnp.zeros((_SUBLANES, _LANES), jnp.float32),
                                unroll=unroll)
            o_ref[...] += acc

        if needs_mask:
            # Over-covered (duplicate) blocks past num_blocks contribute 0.
            gblk = pl.program_id(0) * blocks_per_par + pl.program_id(1)
            pl.when(gblk < num_blocks)(accumulate)
        else:
            accumulate()

    return kernel


def bce_loss_pallas(pred, tar, *, tile_rows=8192, chunk_rows=256):
    """Mean binary cross entropy (PyTorch F.binary_cross_entropy semantics)."""
    assert pred.shape == tar.shape
    n = pred.size
    if n == 0:
        return jnp.float32(0.0)

    # Promote to a common supported dtype so the (sublane,128) tiling rule is
    # derived consistently for both operands (fixes mixed f32/bf16 edge case).
    dt = jnp.promote_types(pred.dtype, tar.dtype)
    if jnp.dtype(dt).itemsize not in (1, 2, 4):
        dt = jnp.dtype(jnp.float32)
    pred_f = pred.astype(dt).reshape(-1)
    tar_f = tar.astype(dt).reshape(-1)

    itemsize = jnp.dtype(dt).itemsize
    sublane = {4: 8, 2: 16, 1: 32}[itemsize]

    rows_total = n // _LANES                                 # full 128-lane rows
    chunk = ((max(chunk_rows, sublane) + sublane - 1) // sublane) * sublane
    tile_rows_eff = (min(tile_rows, rows_total) // chunk) * chunk
    if tile_rows_eff == 0:                                   # fewer rows than one chunk
        tile_rows_eff = (rows_total // sublane) * sublane
        chunk = tile_rows_eff

    total_sum = jnp.float32(0.0)
    kernel_elems = 0

    if tile_rows_eff >= sublane:
        num_blocks = rows_total // tile_rows_eff
        num_par = 2 if num_blocks >= 2 else 1                # engage both TCs on v7x
        blocks_per_par = -(-num_blocks // num_par)           # ceil: no full block to XLA
        needs_mask = blocks_per_par * num_par != num_blocks
        kernel_elems = num_blocks * tile_rows_eff * _LANES

        # Lane-dense 2-D view. Zero-copy reshape when n % 128 == 0 (common case).
        if rows_total * _LANES == n:
            pred2d = pred_f.reshape(rows_total, _LANES)
            tar2d = tar_f.reshape(rows_total, _LANES)
        else:
            # TODO(synk): ragged n (n % 128 != 0) still pays one prefix
            # slice+reshape copy; only the <128-element remainder hits the XLA tail.
            pred2d = pred_f[: rows_total * _LANES].reshape(rows_total, _LANES)
            tar2d = tar_f[: rows_total * _LANES].reshape(rows_total, _LANES)

        if needs_mask:
            def in_map(c, i):
                return (jnp.minimum(c * blocks_per_par + i, num_blocks - 1), 0)
        else:
            def in_map(c, i):
                return (c * blocks_per_par + i, 0)

        in_spec = pl.BlockSpec((tile_rows_eff, _LANES), in_map)
        out_spec = pl.BlockSpec((None, _SUBLANES, _LANES), lambda c, i: (c, 0, 0))

        block_in_bytes = tile_rows_eff * _LANES * itemsize
        out_bytes = num_par * _SUBLANES * _LANES * 4
        # 2 inputs x 2 pipeline buffers + double-buffered output + headroom.
        vmem_limit = 2 * 2 * block_in_bytes + 2 * out_bytes + (8 << 20)

        kernel = _make_bce_kernel(tile_rows_eff, chunk, blocks_per_par,
                                  num_blocks, needs_mask)

        partials = pl.pallas_call(
            kernel,
            out_shape=jax.ShapeDtypeStruct((num_par, _SUBLANES, _LANES),
                                           jnp.float32),
            grid_spec=pltpu.PrefetchScalarGridSpec(
                num_scalar_prefetch=0,
                grid=(num_par, blocks_per_par),
                in_specs=[in_spec, in_spec],
                out_specs=out_spec,
            ),
            compiler_params=pltpu.CompilerParams(
                dimension_semantics=("parallel", "arbitrary"),
                vmem_limit_bytes=int(vmem_limit),
            ),
            cost_estimate=pl.CostEstimate(
                flops=9 * kernel_elems,
                transcendentals=2 * kernel_elems,
                bytes_accessed=2 * kernel_elems * itemsize + out_bytes,
            ),
        )(pred2d, tar2d)

        total_sum = total_sum + jnp.sum(partials, dtype=jnp.float32)

    if kernel_elems < n:
        # Sub-tile remainder only (< one tile of rows plus the ragged <128-elem
        # tail): one small fused XLA pass, exact semantics, no padding needed.
        tail_p = pred_f[kernel_elems:]
        tail_t = tar_f[kernel_elems:]
        total_sum = total_sum + jnp.sum(
            _bce_elementwise(tail_p, tail_t), dtype=jnp.float32)

    return total_sum / jnp.float32(n)


def bce_loss_ref(pred, tar):
    return jnp.mean(_bce_elementwise(pred, tar))


if __name__ == "__main__":
    key = jax.random.PRNGKey(0)
    k1, k2 = jax.random.split(key)

    # Small NCHW-shaped inputs: predictions in (0,1), targets in [0,1].
    shape = (2, 4, 16, 16)
    pred1 = jax.nn.sigmoid(jax.random.normal(k1, shape, dtype=jnp.float32))
    tar1 = jax.random.uniform(k2, shape, dtype=jnp.float32)

    loss = jax.jit(bce_loss_pallas)(pred1, tar1)
    jax.block_until_ready(loss)

    ref = bce_loss_ref(pred1, tar1)
    assert jnp.allclose(loss, ref, rtol=1e-5, atol=1e-6), (loss, ref)

    print("KERNEL_OK")
</pallas_src>

<mosaic_0001>
module attributes {stable_mosaic.version = 11 : i64} {
  func.func @kernel(%arg0: i32, %arg1: i32, %arg2: memref<16x128xf32, #tpu.memory_space<vmem>>, %arg3: memref<16x128xf32, #tpu.memory_space<vmem>>, %arg4: memref<1x8x128xf32, #tpu.memory_space<vmem>>) attributes {dimension_semantics = [#tpu.dimension_semantics<parallel>, #tpu.dimension_semantics<arbitrary>], iteration_bounds = array<i64: 1, 1>, scalar_prefetch = 0 : i64, scratch_operands = 0 : i64, tpu.core_type = #tpu.core_type<tc>, window_params = [{transform_indices = @transform_0, window_bounds = array<i64: 16, 128>}, {transform_indices = @transform_1, window_bounds = array<i64: 16, 128>}, {transform_indices = @transform_2, window_bounds = array<i64: 1, 8, 128>}]} {
    %c0_i32 = arith.constant 0 : i32
    %0 = arith.cmpi eq, %arg1, %c0_i32 : i32
    %1 = arith.extui %0 : i1 to i32
    %c0_i32_0 = arith.constant 0 : i32
    %2 = arith.cmpi ne, %1, %c0_i32_0 : i32
    scf.if %2 {
      %cst_15 = arith.constant 0.000000e+00 : f32
      %34 = vector.broadcast %cst_15 : f32 to vector<8x128xf32>
      %c0_16 = arith.constant 0 : index
      %c0_17 = arith.constant 0 : index
      %c0_18 = arith.constant 0 : index
      %35 = vector.load %arg4[%c0_16, %c0_17, %c0_18] : memref<1x8x128xf32, #tpu.memory_space<vmem>>, vector<1x8x128xf32>
      %36 = vector.shape_cast %35 : vector<1x8x128xf32> to vector<8x128xf32>
      %37 = vector.shape_cast %34 : vector<8x128xf32> to vector<1x8x128xf32>
      tpu.vector_store %arg4[%c0_16, %c0_17, %c0_18], %37 {strides = array<i32>} : memref<1x8x128xf32, #tpu.memory_space<vmem>>, vector<1x8x128xf32>,
    } else {
    }
    %cst = arith.constant 0.000000e+00 : f32
    %3 = vector.broadcast %cst : f32 to vector<8x128xf32>
    %c0_i32_1 = arith.constant 0 : i32
    %c16_i32 = arith.constant 16 : i32
    %4 = arith.muli %c0_i32_1, %c16_i32 : i32
    %5 = tpu.assume_multiple %4, 16 : i32
    %6 = arith.index_cast %5 : i32 to index
    %c0 = arith.constant 0 : index
    %7 = vector.load %arg2[%6, %c0] : memref<16x128xf32, #tpu.memory_space<vmem>>, vector<16x128xf32>
    %8 = arith.index_cast %5 : i32 to index
    %c0_2 = arith.constant 0 : index
    %9 = vector.load %arg3[%8, %c0_2] : memref<16x128xf32, #tpu.memory_space<vmem>>, vector<16x128xf32>
    %10 = math.log %7 : vector<16x128xf32>
    %cst_3 = arith.constant -1.000000e+02 : f32
    %11 = vector.broadcast %cst_3 : f32 to vector<16x128xf32>
    %12 = arith.maximumf %10, %11 : vector<16x128xf32>
    %cst_4 = arith.constant 1.000000e+00 : f32
    %13 = vector.broadcast %cst_4 : f32 to vector<16x128xf32>
    %14 = arith.subf %13, %7 : vector<16x128xf32>
    %15 = math.log %14 : vector<16x128xf32>
    %cst_5 = arith.constant -1.000000e+02 : f32
    %16 = vector.broadcast %cst_5 : f32 to vector<16x128xf32>
    %17 = arith.maximumf %15, %16 : vector<16x128xf32>
    %18 = arith.mulf %9, %12 : vector<16x128xf32>
    %cst_6 = arith.constant 1.000000e+00 : f32
    %19 = vector.broadcast %cst_6 : f32 to vector<16x128xf32>
    %20 = arith.subf %19, %9 : vector<16x128xf32>
    %21 = arith.mulf %20, %17 : vector<16x128xf32>
    %22 = arith.addf %18, %21 : vector<16x128xf32>
    %cst_7 = arith.constant 0.000000e+00 : f32
    %23 = vector.broadcast %cst_7 : f32 to vector<16x128xf32>
    %24 = arith.subf %23, %22 : vector<16x128xf32>
    %25 = vector.shape_cast %24 : vector<16x128xf32> to vector<2x8x128xf32>
    %cst_8 = arith.constant dense<0.000000e+00> : vector<8x128xf32>
    %26 = vector.multi_reduction <add>, %25, %cst_8 [0] : vector<2x8x128xf32> to vector<8x128xf32>
    %27 = arith.addf %3, %26 : vector<8x128xf32>
    %c1_i32 = arith.constant 1 : i32
    %c0_9 = arith.constant 0 : index
    %c0_10 = arith.constant 0 : index
    %c0_11 = arith.constant 0 : index
    %28 = vector.load %arg4[%c0_9, %c0_10, %c0_11] : memref<1x8x128xf32, #tpu.memory_space<vmem>>, vector<1x8x128xf32>
    %29 = vector.shape_cast %28 : vector<1x8x128xf32> to vector<8x128xf32>
    %30 = arith.addf %29, %27 : vector<8x128xf32>
    %c0_12 = arith.constant 0 : index
    %c0_13 = arith.constant 0 : index
    %c0_14 = arith.constant 0 : index
    %31 = vector.load %arg4[%c0_12, %c0_13, %c0_14] : memref<1x8x128xf32, #tpu.memory_space<vmem>>, vector<1x8x128xf32>
    %32 = vector.shape_cast %31 : vector<1x8x128xf32> to vector<8x128xf32>
    %33 = vector.shape_cast %30 : vector<8x128xf32> to vector<1x8x128xf32>
    tpu.vector_store %arg4[%c0_12, %c0_13, %c0_14], %33 {strides = array<i32>} : memref<1x8x128xf32, #tpu.memory_space<vmem>>, vector<1x8x128xf32>,
    return
  }
  func.func @transform_0(%arg0: i32, %arg1: i32) -> (i32, i32) {
    %c1_i32 = arith.constant 1 : i32
    %0 = arith.muli %arg0, %c1_i32 : i32
    %1 = arith.addi %0, %arg1 : i32
    %c0_i32 = arith.constant 0 : i32
    %c0_i32_0 = arith.constant 0 : i32
    return %1, %c0_i32 : i32, i32
  }
  func.func @transform_1(%arg0: i32, %arg1: i32) -> (i32, i32) {
    %c1_i32 = arith.constant 1 : i32
    %0 = arith.muli %arg0, %c1_i32 : i32
    %1 = arith.addi %0, %arg1 : i32
    %c0_i32 = arith.constant 0 : i32
    %c0_i32_0 = arith.constant 0 : i32
    return %1, %c0_i32 : i32, i32
  }
  func.func @transform_2(%arg0: i32, %arg1: i32) -> (i32, i32, i32) {
    %c0_i32 = arith.constant 0 : i32
    %c0_i32_0 = arith.constant 0 : i32
    %c0_i32_1 = arith.constant 0 : i32
    return %arg0, %c0_i32, %c0_i32_0 : i32, i32, i32
  }
}

</mosaic_0001>

<llo_original>
// kernel: bce_loss_pallas.1
$region0: #{bce_loss_pallas.1}
  #allocation0 [shape = 'u32[]', space=smem, size = 0x4, offset = 0x4, fixed_abs, tag = 'smem constant byte address 0x4 - core index']
  #allocation1 [shape = 'u32[144,128]{1,0:T(1,128)}', space=vmem, size = 0x12000, scoped, tag = 'internal scratch']
  %s0 = inlined_call_operand.vmem [shape: f32[16,128], index: 0, kind: input, shape index: {}]
  %s1 = inlined_call_operand.vmem [shape: f32[16,128], index: 1, kind: input, shape index: {}]
  %s2 = inlined_call_operand.vmem [shape: f32[1,8,128], index: 2, kind: output, shape index: {}]
  %s3 = sld [smem:[#allocation0]]
  $region22: #{bce_loss_pallas.1} parent=0
    _
  %s5 = ssub.s32 1, %s3
  %s6 = scalar_select 0, %s5, %s3
  // Predicated region
  $region2: #{bce_loss_pallas.1} parent=0 // pred_check
    _
  $region3: #{bce_loss_pallas.1} parent=0 // pred_check_branch
    %8 = sbr.rel (0) target = $region5
  $region4: #{bce_loss_pallas.1} parent=0 // pred_region
    %s9 = sadd.s32 0, 0
    %s10 = smul.u32 2, %s9
    %p11 = scmp.lt.s32.totalorder %s10, 1
    %s12 = scalar_select %p11, %s10, 1
    %s13 = smul.addr %s12, 8
    %s14 = scalar_lea.vmem %s0, %s13
    %s15 = sadd.s32 0, 0
    %s16 = smul.u32 2, %s15
  $region5: #{bce_loss_pallas.1} parent=0 // pred_fallthru
    _
  // Predicated region
  $region6: #{bce_loss_pallas.1} parent=0 // pred_check
    _
  $region7: #{bce_loss_pallas.1} parent=0 // pred_check_branch
    %18 = sbr.rel (0) target = $region9
  $region8: #{bce_loss_pallas.1} parent=0 // pred_region
    %s19 = sadd.s32 0, 0
    %s20 = smul.u32 2, %s19
    %p21 = scmp.lt.s32.totalorder %s20, 1
    %s22 = scalar_select %p21, %s20, 1
    %s23 = smul.addr %s22, 8
    %s24 = scalar_lea.vmem %s1, %s23
    %s25 = sadd.s32 0, 0
    %s26 = smul.u32 2, %s25
  $region9: #{bce_loss_pallas.1} parent=0 // pred_fallthru
    _
  %s27 = sadd.s32 0, 0
  %s28 = smul.u32 2, %s27
  %p29 = scmp.lt.s32.totalorder %s28, 1
  %s30 = scalar_select %p29, %s28, 1
  %s31 = smul.addr %s30, 8
  %s32 = scalar_lea.vmem %s0, %s31
  %s33 = sadd.s32 0, 0
  %s34 = smul.u32 2, %s33
  %p35 = scmp.lt.s32.totalorder %s34, 1
  %s36 = scalar_select %p35, %s34, 1
  %s37 = smul.addr %s36, 8
  %s38 = scalar_lea.vmem %s1, %s37
  %s39 = sadd.s32 0, 0
  %s40 = smul.u32 2, %s39
  %p41 = scmp.lt.s32.totalorder %s40, 1
  %s42 = scalar_select %p41, %s40, 1
  %s43 = smul.addr %s42, 8
  %s44 = scalar_lea.vmem %s0, %s43
  %s45 = sadd.s32 0, 0
  %s46 = smul.u32 2, %s45
  %s47 = sadd.s32 0, 0
  %s48 = smul.u32 2, %s47
  %p49 = scmp.lt.s32.totalorder %s48, 1
  %s50 = scalar_select %p49, %s48, 1
  %s51 = smul.addr %s50, 8
  %s52 = scalar_lea.vmem %s1, %s51
  %s53 = sadd.s32 0, 0
  %s54 = smul.u32 2, %s53
  %p55 = scmp.eq.s32.totalorder 0, 0
  // Predicated region
  $region10: #{bce_loss_pallas.1} parent=0 // pred_check
    %p56 = pneg %p55
  $region11: #{bce_loss_pallas.1} parent=0 // pred_check_branch
    %58 = sbr.rel (%p56) target = $region13
  $region12: #{bce_loss_pallas.1} parent=0 // pred_region
    %59 = vst [vmem:[%s2] sm:$0xff] 0.0
  $region13: #{bce_loss_pallas.1} parent=0 // pred_fallthru
    _
  %v60 = vld [vmem:[%s44] sm:$0xff]
  %v61 = vld [vmem:[%s44 + $0x8] sm:$0xff]
  %v62 = vld [vmem:[%s52] sm:$0xff]
  %v63 = vld [vmem:[%s52 + $0x8] sm:$0xff]
  %v64 = vlog2.pop %v60
  %v65 = vmul.f32 %v64, 0.6931472
  %v66 = vlog2.pop %v61
  %v67 = vmul.f32 %v66, 0.6931472
  %v68 = vmax.f32 %v65, -100.0
  %v69 = vmax.f32 %v67, -100.0
  %v70 = vsub.f32 1.0, %v60
  %v71 = vsub.f32 1.0, %v61
  %v72 = vlog2.pop %v70
  %v73 = vmul.f32 %v72, 0.6931472
  %v74 = vlog2.pop %v71
  %v75 = vmul.f32 %v74, 0.6931472
  %v76 = vmax.f32 %v73, -100.0
  %v77 = vmax.f32 %v75, -100.0
  %v78 = vmul.f32 %v62, %v68
  %v79 = vmul.f32 %v63, %v69
  %v80 = vsub.f32 1.0, %v62
  %v81 = vsub.f32 1.0, %v63
  %v82 = vmul.f32 %v80, %v76
  %v83 = vmul.f32 %v81, %v77
  %v84 = vadd.f32 %v78, %v82
  %v85 = vadd.f32 %v79, %v83
  %v86 = vsub.f32 0.0, %v84
  %v87 = vsub.f32 0.0, %v85
  %v88 = vadd.f32 %v86, %v87
  %v89 = vadd.f32 %v88, 0.0
  %v90 = vld [vmem:[%s2] sm:$0xff]
  %v91 = vadd.f32 %v90, %v89
  %92 = vst [vmem:[%s2] sm:$0xff] %v91
  // Predicated region
  $region14: #{bce_loss_pallas.1} parent=0 // pred_check
    _
  $region15: #{bce_loss_pallas.1} parent=0 // pred_check_branch
    %94 = sbr.rel (0) target = $region17
  $region16: #{bce_loss_pallas.1} parent=0 // pred_region
    _
  $region17: #{bce_loss_pallas.1} parent=0 // pred_fallthru
    _
  // Predicated region
  $region18: #{bce_loss_pallas.1} parent=0 // pred_check
    _
  $region19: #{bce_loss_pallas.1} parent=0 // pred_check_branch
    %96 = sbr.rel (0) target = $region21
  $region20: #{bce_loss_pallas.1} parent=0 // pred_region
    _
  $region21: #{bce_loss_pallas.1} parent=0 // pred_fallthru
    _

</llo_original>
